<compile_context>
chip_gen: v7x
topology: tpu7x:2x2x1
jax: 0.10.0
libtpu: 0.0.40
codegen_flags: <defaults>
</compile_context>

<pallas_src>
import jax
import jax.numpy as jnp
from jax import lax
from jax.experimental import pallas as pl
from jax.experimental.pallas import tpu as pltpu


def rnnlm_kernel(ids_ref, emb_ref, h0_ref, H_ref, I_ref, b1_ref, U_ref, b2_ref,
                 logits_ref, last_ref, h_all):
    TB = ids_ref.shape[0]          # T * B (time-major flattened)
    V, _E = emb_ref.shape
    B, Hd = h0_ref.shape
    T = TB // B

    # ---- Embedding lookup in-kernel via one-hot matmul (MXU is idle anyway).
    ids = ids_ref[...]                                          # (TB, 1) int32
    col = lax.broadcasted_iota(jnp.int32, (TB, V), 1)           # (TB, V)
    onehot = jnp.where(ids == col, 1.0, 0.0).astype(jnp.bfloat16)
    x = jnp.dot(onehot, emb_ref[...],
                preferred_element_type=jnp.float32)             # (TB, E) f32

    # ---- Input contribution for all timesteps in one batched matmul.
    xi = jnp.dot(x.astype(jnp.bfloat16), I_ref[...],
                 preferred_element_type=jnp.float32) + b1_ref[...]   # (TB, Hd)

    # ---- Sequential recurrence, fully unrolled (T is small & static).
    # TODO(synk): nn.Dropout on inputs/outputs is identity (eval mode / p=0).
    h = h0_ref[...]                                             # (B, Hd) f32
    for t in range(T):
        h = jnp.maximum(
            jnp.dot(h.astype(jnp.bfloat16), H_ref[...],
                    preferred_element_type=jnp.float32)
            + xi[t * B:(t + 1) * B, :],
            0.0,
        )
        h_all[pl.ds(t * B, B), :] = h
    last_ref[...] = h

    # ---- Hoisted vocab projection: one (TB, Hd) x (Hd, V) matmul.
    logits_ref[...] = (
        jnp.dot(h_all[...].astype(jnp.bfloat16), U_ref[...],
                preferred_element_type=jnp.float32)
        + b2_ref[...]
    )


def rnnlm_forward(input_ids, initial_state, params):
    """input_ids: (B, T) int32 token ids; initial_state: (B, Hd) f32.

    Returns (logits, last_state) with logits shaped (T, B, V) — the stacked
    version of the PyTorch list of per-step (B, V) outputs.
    """
    emb, H, I, b1, U, b2 = (params["emb"], params["H"], params["I"],
                            params["b1"], params["U"], params["b2"])
    B, T = input_ids.shape
    V, E = emb.shape
    Hd = H.shape[0]
    TB = T * B

    # Time-major flat ids (tiny (B,T) transpose; the big tensors never move).
    ids_tm = jnp.transpose(input_ids).reshape(TB, 1).astype(jnp.int32)

    # bf16 weights for the MXU; biases / hidden state stay f32.
    emb_bf = emb.astype(jnp.bfloat16)
    H_bf = H.astype(jnp.bfloat16)
    I_bf = I.astype(jnp.bfloat16)
    U_bf = U.astype(jnp.bfloat16)
    b1_2d = b1.reshape(1, Hd).astype(jnp.float32)
    b2_2d = b2.reshape(1, V).astype(jnp.float32)
    h0 = initial_state.astype(jnp.float32)

    vmem = pl.BlockSpec(memory_space=pltpu.MemorySpace.VMEM)

    logits_flat, last_state = pl.pallas_call(
        rnnlm_kernel,
        out_shape=(
            jax.ShapeDtypeStruct((TB, V), jnp.float32),
            jax.ShapeDtypeStruct((B, Hd), jnp.float32),
        ),
        in_specs=[vmem] * 8,
        out_specs=(vmem, vmem),
        scratch_shapes=[pltpu.VMEM((TB, Hd), jnp.float32)],
    )(ids_tm, emb_bf, h0, H_bf, I_bf, b1_2d, U_bf, b2_2d)

    logits = logits_flat.reshape(T, B, V)
    return logits, last_state


def rnnlm_reference(input_ids, initial_state, params):
    """Pure-JAX f32 reference mirroring the PyTorch forward (dropout = identity)."""
    emb, H, I, b1, U, b2 = (params["emb"], params["H"], params["I"],
                            params["b1"], params["U"], params["b2"])
    x = jnp.take(emb, input_ids, axis=0)          # (B, T, E)
    T = x.shape[1]
    hidden = initial_state
    logits_list = []
    for t in range(T):
        x_t = x[:, t, :]
        hidden = jax.nn.relu(hidden @ H + x_t @ I + b1)
        logits_list.append(hidden @ U + b2)
    return jnp.stack(logits_list, axis=0), hidden


if __name__ == "__main__":
    # Small config consistent with the module's shapes.
    batch_size = 8
    num_steps = 8
    embed_size = 32
    hidden_size = 32
    vocab_size = 128

    key = jax.random.PRNGKey(0)
    k_emb, k_H, k_I, k_b1, k_U, k_b2, k_ids = jax.random.split(key, 7)

    params = {
        "emb": jax.random.normal(k_emb, (vocab_size, embed_size), jnp.float32) * 0.1,
        "H": jax.random.normal(k_H, (hidden_size, hidden_size), jnp.float32) * 0.1,
        "I": jax.random.normal(k_I, (embed_size, hidden_size), jnp.float32) * 0.1,
        "b1": jax.random.normal(k_b1, (hidden_size,), jnp.float32) * 0.1,
        "U": jax.random.normal(k_U, (hidden_size, vocab_size), jnp.float32) * 0.1,
        "b2": jax.random.normal(k_b2, (vocab_size,), jnp.float32) * 0.1,
    }

    input_ids = jax.random.randint(k_ids, (batch_size, num_steps), 0, vocab_size,
                                   dtype=jnp.int32)
    initial_state = jnp.zeros((batch_size, hidden_size), jnp.float32)  # init_hidden()

    fwd = jax.jit(rnnlm_forward)
    logits, last_state = fwd(input_ids, initial_state, params)
    jax.block_until_ready((logits, last_state))

    ref_logits, ref_last = rnnlm_reference(input_ids, initial_state, params)
    # bf16 MXU operands (f32 accumulation) -> relaxed tolerance per perf review.
    assert jnp.allclose(logits, ref_logits, atol=2e-2, rtol=2e-2)
    assert jnp.allclose(last_state, ref_last, atol=2e-2, rtol=2e-2)

    print("KERNEL_OK")
</pallas_src>

<mosaic_0001>
module attributes {stable_mosaic.version = 11 : i64} {
  func.func @rnnlm_kernel(%arg0: memref<64x1xi32, #tpu.memory_space<vmem>>, %arg1: memref<128x32xbf16, #tpu.memory_space<vmem>>, %arg2: memref<8x32xf32, #tpu.memory_space<vmem>>, %arg3: memref<32x32xbf16, #tpu.memory_space<vmem>>, %arg4: memref<32x32xbf16, #tpu.memory_space<vmem>>, %arg5: memref<1x32xf32, #tpu.memory_space<vmem>>, %arg6: memref<32x128xbf16, #tpu.memory_space<vmem>>, %arg7: memref<1x128xf32, #tpu.memory_space<vmem>>, %arg8: memref<64x128xf32, #tpu.memory_space<vmem>>, %arg9: memref<8x32xf32, #tpu.memory_space<vmem>>, %arg10: memref<64x32xf32, #tpu.memory_space<vmem>>) attributes {dimension_semantics = [], scalar_prefetch = 0 : i64, scratch_operands = 1 : i64, tpu.core_type = #tpu.core_type<tc>} {
    %c0 = arith.constant 0 : index
    %c0_0 = arith.constant 0 : index
    %0 = vector.load %arg0[%c0, %c0_0] : memref<64x1xi32, #tpu.memory_space<vmem>>, vector<64x1xi32>
    %1 = tpu.iota {dimensions = array<i32: 1>} : vector<64x128xi32>
    %2 = vector.broadcast %0 : vector<64x1xi32> to vector<64x128xi32>
    %3 = arith.cmpi eq, %2, %1 : vector<64x128xi32>
    %cst = arith.constant 1.000000e+00 : f32
    %cst_1 = arith.constant 0.000000e+00 : f32
    %4 = vector.broadcast %cst : f32 to vector<64x128xf32>
    %5 = vector.broadcast %cst_1 : f32 to vector<64x128xf32>
    %6 = arith.select %3, %4, %5 : vector<64x128xi1>, vector<64x128xf32>
    %7 = arith.truncf %6 : vector<64x128xf32> to vector<64x128xbf16>
    %c0_2 = arith.constant 0 : index
    %c0_3 = arith.constant 0 : index
    %8 = vector.load %arg1[%c0_2, %c0_3] : memref<128x32xbf16, #tpu.memory_space<vmem>>, vector<128x32xbf16>
    %cst_4 = arith.constant dense<0.000000e+00> : vector<64x32xf32>
    %9 = tpu.matmul %7, %8, %cst_4 {dimension_numbers = #tpu.dot_dimension_numbers<[1], [0], [0], [1], [0, 0, 1, 1], [], []>} : vector<64x128xbf16>, vector<128x32xbf16>, vector<64x32xf32> -> vector<64x32xf32>
    %10 = arith.truncf %9 : vector<64x32xf32> to vector<64x32xbf16>
    %c0_5 = arith.constant 0 : index
    %c0_6 = arith.constant 0 : index
    %11 = vector.load %arg4[%c0_5, %c0_6] : memref<32x32xbf16, #tpu.memory_space<vmem>>, vector<32x32xbf16>
    %cst_7 = arith.constant dense<0.000000e+00> : vector<64x32xf32>
    %12 = tpu.matmul %10, %11, %cst_7 {dimension_numbers = #tpu.dot_dimension_numbers<[1], [0], [0], [1], [0, 0, 1, 1], [], []>} : vector<64x32xbf16>, vector<32x32xbf16>, vector<64x32xf32> -> vector<64x32xf32>
    %c0_8 = arith.constant 0 : index
    %c0_9 = arith.constant 0 : index
    %13 = vector.load %arg5[%c0_8, %c0_9] : memref<1x32xf32, #tpu.memory_space<vmem>>, vector<1x32xf32>
    %14 = vector.broadcast %13 : vector<1x32xf32> to vector<64x32xf32>
    %15 = arith.addf %12, %14 : vector<64x32xf32>
    %c0_10 = arith.constant 0 : index
    %c0_11 = arith.constant 0 : index
    %16 = vector.load %arg2[%c0_10, %c0_11] : memref<8x32xf32, #tpu.memory_space<vmem>>, vector<8x32xf32>
    %17 = arith.truncf %16 : vector<8x32xf32> to vector<8x32xbf16>
    %c0_12 = arith.constant 0 : index
    %c0_13 = arith.constant 0 : index
    %18 = vector.load %arg3[%c0_12, %c0_13] : memref<32x32xbf16, #tpu.memory_space<vmem>>, vector<32x32xbf16>
    %cst_14 = arith.constant dense<0.000000e+00> : vector<8x32xf32>
    %19 = tpu.matmul %17, %18, %cst_14 {dimension_numbers = #tpu.dot_dimension_numbers<[1], [0], [0], [1], [0, 0, 1, 1], [], []>} : vector<8x32xbf16>, vector<32x32xbf16>, vector<8x32xf32> -> vector<8x32xf32>
    %20 = vector.extract_strided_slice %15 {offsets = [0, 0], sizes = [8, 32], strides = [1, 1]} : vector<64x32xf32> to vector<8x32xf32>
    %21 = arith.addf %19, %20 : vector<8x32xf32>
    %cst_15 = arith.constant 0.000000e+00 : f32
    %22 = vector.broadcast %cst_15 : f32 to vector<8x32xf32>
    %23 = arith.maximumf %21, %22 : vector<8x32xf32>
    %c0_16 = arith.constant 0 : index
    %c0_17 = arith.constant 0 : index
    %24 = vector.load %arg10[%c0_16, %c0_17] : memref<64x32xf32, #tpu.memory_space<vmem>>, vector<8x32xf32>
    tpu.vector_store %arg10[%c0_16, %c0_17], %23 {strides = array<i32>} : memref<64x32xf32, #tpu.memory_space<vmem>>, vector<8x32xf32>,
    %25 = arith.truncf %23 : vector<8x32xf32> to vector<8x32xbf16>
    %c0_18 = arith.constant 0 : index
    %c0_19 = arith.constant 0 : index
    %26 = vector.load %arg3[%c0_18, %c0_19] : memref<32x32xbf16, #tpu.memory_space<vmem>>, vector<32x32xbf16>
    %cst_20 = arith.constant dense<0.000000e+00> : vector<8x32xf32>
    %27 = tpu.matmul %25, %26, %cst_20 {dimension_numbers = #tpu.dot_dimension_numbers<[1], [0], [0], [1], [0, 0, 1, 1], [], []>} : vector<8x32xbf16>, vector<32x32xbf16>, vector<8x32xf32> -> vector<8x32xf32>
    %28 = vector.extract_strided_slice %15 {offsets = [8, 0], sizes = [8, 32], strides = [1, 1]} : vector<64x32xf32> to vector<8x32xf32>
    %29 = arith.addf %27, %28 : vector<8x32xf32>
    %cst_21 = arith.constant 0.000000e+00 : f32
    %30 = vector.broadcast %cst_21 : f32 to vector<8x32xf32>
    %31 = arith.maximumf %29, %30 : vector<8x32xf32>
    %c8 = arith.constant 8 : index
    %c0_22 = arith.constant 0 : index
    %32 = vector.load %arg10[%c8, %c0_22] : memref<64x32xf32, #tpu.memory_space<vmem>>, vector<8x32xf32>
    tpu.vector_store %arg10[%c8, %c0_22], %31 {strides = array<i32>} : memref<64x32xf32, #tpu.memory_space<vmem>>, vector<8x32xf32>,
    %33 = arith.truncf %31 : vector<8x32xf32> to vector<8x32xbf16>
    %c0_23 = arith.constant 0 : index
    %c0_24 = arith.constant 0 : index
    %34 = vector.load %arg3[%c0_23, %c0_24] : memref<32x32xbf16, #tpu.memory_space<vmem>>, vector<32x32xbf16>
    %cst_25 = arith.constant dense<0.000000e+00> : vector<8x32xf32>
    %35 = tpu.matmul %33, %34, %cst_25 {dimension_numbers = #tpu.dot_dimension_numbers<[1], [0], [0], [1], [0, 0, 1, 1], [], []>} : vector<8x32xbf16>, vector<32x32xbf16>, vector<8x32xf32> -> vector<8x32xf32>
    %36 = vector.extract_strided_slice %15 {offsets = [16, 0], sizes = [8, 32], strides = [1, 1]} : vector<64x32xf32> to vector<8x32xf32>
    %37 = arith.addf %35, %36 : vector<8x32xf32>
    %cst_26 = arith.constant 0.000000e+00 : f32
    %38 = vector.broadcast %cst_26 : f32 to vector<8x32xf32>
    %39 = arith.maximumf %37, %38 : vector<8x32xf32>
    %c16 = arith.constant 16 : index
    %c0_27 = arith.constant 0 : index
    %40 = vector.load %arg10[%c16, %c0_27] : memref<64x32xf32, #tpu.memory_space<vmem>>, vector<8x32xf32>
    tpu.vector_store %arg10[%c16, %c0_27], %39 {strides = array<i32>} : memref<64x32xf32, #tpu.memory_space<vmem>>, vector<8x32xf32>,
    %41 = arith.truncf %39 : vector<8x32xf32> to vector<8x32xbf16>
    %c0_28 = arith.constant 0 : index
    %c0_29 = arith.constant 0 : index
    %42 = vector.load %arg3[%c0_28, %c0_29] : memref<32x32xbf16, #tpu.memory_space<vmem>>, vector<32x32xbf16>
    %cst_30 = arith.constant dense<0.000000e+00> : vector<8x32xf32>
    %43 = tpu.matmul %41, %42, %cst_30 {dimension_numbers = #tpu.dot_dimension_numbers<[1], [0], [0], [1], [0, 0, 1, 1], [], []>} : vector<8x32xbf16>, vector<32x32xbf16>, vector<8x32xf32> -> vector<8x32xf32>
    %44 = vector.extract_strided_slice %15 {offsets = [24, 0], sizes = [8, 32], strides = [1, 1]} : vector<64x32xf32> to vector<8x32xf32>
    %45 = arith.addf %43, %44 : vector<8x32xf32>
    %cst_31 = arith.constant 0.000000e+00 : f32
    %46 = vector.broadcast %cst_31 : f32 to vector<8x32xf32>
    %47 = arith.maximumf %45, %46 : vector<8x32xf32>
    %c24 = arith.constant 24 : index
    %c0_32 = arith.constant 0 : index
    %48 = vector.load %arg10[%c24, %c0_32] : memref<64x32xf32, #tpu.memory_space<vmem>>, vector<8x32xf32>
    tpu.vector_store %arg10[%c24, %c0_32], %47 {strides = array<i32>} : memref<64x32xf32, #tpu.memory_space<vmem>>, vector<8x32xf32>,
    %49 = arith.truncf %47 : vector<8x32xf32> to vector<8x32xbf16>
    %c0_33 = arith.constant 0 : index
    %c0_34 = arith.constant 0 : index
    %50 = vector.load %arg3[%c0_33, %c0_34] : memref<32x32xbf16, #tpu.memory_space<vmem>>, vector<32x32xbf16>
    %cst_35 = arith.constant dense<0.000000e+00> : vector<8x32xf32>
    %51 = tpu.matmul %49, %50, %cst_35 {dimension_numbers = #tpu.dot_dimension_numbers<[1], [0], [0], [1], [0, 0, 1, 1], [], []>} : vector<8x32xbf16>, vector<32x32xbf16>, vector<8x32xf32> -> vector<8x32xf32>
    %52 = vector.extract_strided_slice %15 {offsets = [32, 0], sizes = [8, 32], strides = [1, 1]} : vector<64x32xf32> to vector<8x32xf32>
    %53 = arith.addf %51, %52 : vector<8x32xf32>
    %cst_36 = arith.constant 0.000000e+00 : f32
    %54 = vector.broadcast %cst_36 : f32 to vector<8x32xf32>
    %55 = arith.maximumf %53, %54 : vector<8x32xf32>
    %c32 = arith.constant 32 : index
    %c0_37 = arith.constant 0 : index
    %56 = vector.load %arg10[%c32, %c0_37] : memref<64x32xf32, #tpu.memory_space<vmem>>, vector<8x32xf32>
    tpu.vector_store %arg10[%c32, %c0_37], %55 {strides = array<i32>} : memref<64x32xf32, #tpu.memory_space<vmem>>, vector<8x32xf32>,
    %57 = arith.truncf %55 : vector<8x32xf32> to vector<8x32xbf16>
    %c0_38 = arith.constant 0 : index
    %c0_39 = arith.constant 0 : index
    %58 = vector.load %arg3[%c0_38, %c0_39] : memref<32x32xbf16, #tpu.memory_space<vmem>>, vector<32x32xbf16>
    %cst_40 = arith.constant dense<0.000000e+00> : vector<8x32xf32>
    %59 = tpu.matmul %57, %58, %cst_40 {dimension_numbers = #tpu.dot_dimension_numbers<[1], [0], [0], [1], [0, 0, 1, 1], [], []>} : vector<8x32xbf16>, vector<32x32xbf16>, vector<8x32xf32> -> vector<8x32xf32>
    %60 = vector.extract_strided_slice %15 {offsets = [40, 0], sizes = [8, 32], strides = [1, 1]} : vector<64x32xf32> to vector<8x32xf32>
    %61 = arith.addf %59, %60 : vector<8x32xf32>
    %cst_41 = arith.constant 0.000000e+00 : f32
    %62 = vector.broadcast %cst_41 : f32 to vector<8x32xf32>
    %63 = arith.maximumf %61, %62 : vector<8x32xf32>
    %c40 = arith.constant 40 : index
    %c0_42 = arith.constant 0 : index
    %64 = vector.load %arg10[%c40, %c0_42] : memref<64x32xf32, #tpu.memory_space<vmem>>, vector<8x32xf32>
    tpu.vector_store %arg10[%c40, %c0_42], %63 {strides = array<i32>} : memref<64x32xf32, #tpu.memory_space<vmem>>, vector<8x32xf32>,
    %65 = arith.truncf %63 : vector<8x32xf32> to vector<8x32xbf16>
    %c0_43 = arith.constant 0 : index
    %c0_44 = arith.constant 0 : index
    %66 = vector.load %arg3[%c0_43, %c0_44] : memref<32x32xbf16, #tpu.memory_space<vmem>>, vector<32x32xbf16>
    %cst_45 = arith.constant dense<0.000000e+00> : vector<8x32xf32>
    %67 = tpu.matmul %65, %66, %cst_45 {dimension_numbers = #tpu.dot_dimension_numbers<[1], [0], [0], [1], [0, 0, 1, 1], [], []>} : vector<8x32xbf16>, vector<32x32xbf16>, vector<8x32xf32> -> vector<8x32xf32>
    %68 = vector.extract_strided_slice %15 {offsets = [48, 0], sizes = [8, 32], strides = [1, 1]} : vector<64x32xf32> to vector<8x32xf32>
    %69 = arith.addf %67, %68 : vector<8x32xf32>
    %cst_46 = arith.constant 0.000000e+00 : f32
    %70 = vector.broadcast %cst_46 : f32 to vector<8x32xf32>
    %71 = arith.maximumf %69, %70 : vector<8x32xf32>
    %c48 = arith.constant 48 : index
    %c0_47 = arith.constant 0 : index
    %72 = vector.load %arg10[%c48, %c0_47] : memref<64x32xf32, #tpu.memory_space<vmem>>, vector<8x32xf32>
    tpu.vector_store %arg10[%c48, %c0_47], %71 {strides = array<i32>} : memref<64x32xf32, #tpu.memory_space<vmem>>, vector<8x32xf32>,
    %73 = arith.truncf %71 : vector<8x32xf32> to vector<8x32xbf16>
    %c0_48 = arith.constant 0 : index
    %c0_49 = arith.constant 0 : index
    %74 = vector.load %arg3[%c0_48, %c0_49] : memref<32x32xbf16, #tpu.memory_space<vmem>>, vector<32x32xbf16>
    %cst_50 = arith.constant dense<0.000000e+00> : vector<8x32xf32>
    %75 = tpu.matmul %73, %74, %cst_50 {dimension_numbers = #tpu.dot_dimension_numbers<[1], [0], [0], [1], [0, 0, 1, 1], [], []>} : vector<8x32xbf16>, vector<32x32xbf16>, vector<8x32xf32> -> vector<8x32xf32>
    %76 = vector.extract_strided_slice %15 {offsets = [56, 0], sizes = [8, 32], strides = [1, 1]} : vector<64x32xf32> to vector<8x32xf32>
    %77 = arith.addf %75, %76 : vector<8x32xf32>
    %cst_51 = arith.constant 0.000000e+00 : f32
    %78 = vector.broadcast %cst_51 : f32 to vector<8x32xf32>
    %79 = arith.maximumf %77, %78 : vector<8x32xf32>
    %c56 = arith.constant 56 : index
    %c0_52 = arith.constant 0 : index
    %80 = vector.load %arg10[%c56, %c0_52] : memref<64x32xf32, #tpu.memory_space<vmem>>, vector<8x32xf32>
    tpu.vector_store %arg10[%c56, %c0_52], %79 {strides = array<i32>} : memref<64x32xf32, #tpu.memory_space<vmem>>, vector<8x32xf32>,
    %c0_53 = arith.constant 0 : index
    %c0_54 = arith.constant 0 : index
    %81 = vector.load %arg9[%c0_53, %c0_54] : memref<8x32xf32, #tpu.memory_space<vmem>>, vector<8x32xf32>
    tpu.vector_store %arg9[%c0_53, %c0_54], %79 {strides = array<i32>} : memref<8x32xf32, #tpu.memory_space<vmem>>, vector<8x32xf32>,
    %c0_55 = arith.constant 0 : index
    %c0_56 = arith.constant 0 : index
    %82 = vector.load %arg10[%c0_55, %c0_56] : memref<64x32xf32, #tpu.memory_space<vmem>>, vector<64x32xf32>
    %83 = arith.truncf %82 : vector<64x32xf32> to vector<64x32xbf16>
    %c0_57 = arith.constant 0 : index
    %c0_58 = arith.constant 0 : index
    %84 = vector.load %arg6[%c0_57, %c0_58] : memref<32x128xbf16, #tpu.memory_space<vmem>>, vector<32x128xbf16>
    %cst_59 = arith.constant dense<0.000000e+00> : vector<64x128xf32>
    %85 = tpu.matmul %83, %84, %cst_59 {dimension_numbers = #tpu.dot_dimension_numbers<[1], [0], [0], [1], [0, 0, 1, 1], [], []>} : vector<64x32xbf16>, vector<32x128xbf16>, vector<64x128xf32> -> vector<64x128xf32>
    %c0_60 = arith.constant 0 : index
    %c0_61 = arith.constant 0 : index
    %86 = vector.load %arg7[%c0_60, %c0_61] : memref<1x128xf32, #tpu.memory_space<vmem>>, vector<1x128xf32>
    %87 = vector.broadcast %86 : vector<1x128xf32> to vector<64x128xf32>
    %88 = arith.addf %85, %87 : vector<64x128xf32>
    %c0_62 = arith.constant 0 : index
    %c0_63 = arith.constant 0 : index
    %89 = vector.load %arg8[%c0_62, %c0_63] : memref<64x128xf32, #tpu.memory_space<vmem>>, vector<64x128xf32>
    tpu.vector_store %arg8[%c0_62, %c0_63], %88 {strides = array<i32>} : memref<64x128xf32, #tpu.memory_space<vmem>>, vector<64x128xf32>,
    return
  }
}

</mosaic_0001>

<llo_original>
// kernel: rnnlm_forward.1
$region0: #{rnnlm_forward.1}
  #allocation0 [shape = 'u32[]', space=smem, size = 0x4, offset = 0x4, fixed_abs, tag = 'smem constant byte address 0x4 - core index']
  #allocation1 [shape = 'u32[144,128]{1,0:T(1,128)}', space=vmem, size = 0x12000, scoped, tag = 'internal scratch']
  #allocation2 [shape = 'f32[64,32]{1,0:T(8,128)}', space=vmem, size = 0x8000, scoped, tag = 'scratch operand']
  %s0 = inlined_call_operand.vmem [shape: s32[64,1], index: 0, kind: input, shape index: {}]
  %s1 = inlined_call_operand.vmem [shape: bf16[128,32], index: 1, kind: input, shape index: {}]
  %s2 = inlined_call_operand.vmem [shape: f32[8,32], index: 2, kind: input, shape index: {}]
  %s3 = inlined_call_operand.vmem [shape: bf16[32,32], index: 3, kind: input, shape index: {}]
  %s4 = inlined_call_operand.vmem [shape: bf16[32,32], index: 4, kind: input, shape index: {}]
  %s5 = inlined_call_operand.vmem [shape: f32[1,32], index: 5, kind: input, shape index: {}]
  %s6 = inlined_call_operand.vmem [shape: bf16[32,128], index: 6, kind: input, shape index: {}]
  %s7 = inlined_call_operand.vmem [shape: f32[1,128], index: 7, kind: input, shape index: {}]
  %s8 = inlined_call_operand.hbm [shape: f32[64,128], index: 8, kind: output, shape index: {0}]
  %s9 = inlined_call_operand.hbm [shape: f32[8,32], index: 9, kind: output, shape index: {1}]
  %10 = xla_tuple %s8, %s9
  %s11 = sld [smem:[#allocation0]]
  $region50: #{rnnlm_forward.1} parent=0
    _
  %s13 = ssub.s32 1, %s11
  %s14 = scalar_select 0, %s13, %s11
  $region1: #{rnnlm_forward.1} parent=0
    #allocation3 [shape = 'u8[32768]{0}', space=vmem, size = 0x8000, scoped, tag = 'output window, operand 0, single buffered']
    #allocation4 [shape = 's32[1]{0}', space=sflag, size = 0x4, scoped, tag = 'scoped memory for rnnlm_forward.1']
    #allocation5 [shape = 'u8[4096]{0}', space=vmem, size = 0x1000, scoped, tag = 'output window, operand 1, single buffered']
    #allocation6 [shape = 's32[1]{0}', space=sflag, size = 0x4, scoped, tag = 'scoped memory for rnnlm_forward.1']
    %15 = vsyncpa [#allocation4], 0
    %16 = vsyncpa [#allocation6], 0
    // Predicated region
    $region2: #{rnnlm_forward.1} parent=1 // pred_check
      _
    $region3: #{rnnlm_forward.1} parent=1 // pred_check_branch
      %18 = sbr.rel (0) target = $region5
    $region4: #{rnnlm_forward.1} parent=1 // pred_region
      _
    $region5: #{rnnlm_forward.1} parent=1 // pred_fallthru
      _
    // Predicated region
    $region6: #{rnnlm_forward.1} parent=1 // pred_check
      _
    $region7: #{rnnlm_forward.1} parent=1 // pred_check_branch
      %20 = sbr.rel (0) target = $region9
    $region8: #{rnnlm_forward.1} parent=1 // pred_region
      _
    $region9: #{rnnlm_forward.1} parent=1 // pred_fallthru
      _
    // Predicated region
    $region10: #{rnnlm_forward.1} parent=1 // pred_check
      _
    $region11: #{rnnlm_forward.1} parent=1 // pred_check_branch
      %22 = sbr.rel (0) target = $region13
    $region12: #{rnnlm_forward.1} parent=1 // pred_region
      _
    $region13: #{rnnlm_forward.1} parent=1 // pred_fallthru
      _
    // Predicated region
    $region14: #{rnnlm_forward.1} parent=1 // pred_check
      _
    $region15: #{rnnlm_forward.1} parent=1 // pred_check_branch
      %24 = sbr.rel (0) target = $region17
    $region16: #{rnnlm_forward.1} parent=1 // pred_region
      _
    $region17: #{rnnlm_forward.1} parent=1 // pred_fallthru
      _
    // Predicated region
    $region18: #{rnnlm_forward.1} parent=1 // pred_check
      _
    $region19: #{rnnlm_forward.1} parent=1 // pred_check_branch
      %26 = sbr.rel (0) target = $region21
    $region20: #{rnnlm_forward.1} parent=1 // pred_region
      _
    $region21: #{rnnlm_forward.1} parent=1 // pred_fallthru
      _
    // Predicated region
    $region22: #{rnnlm_forward.1} parent=1 // pred_check
      _
    $region23: #{rnnlm_forward.1} parent=1 // pred_check_branch
      %28 = sbr.rel (0) target = $region25
    $region24: #{rnnlm_forward.1} parent=1 // pred_region
      _
    $region25: #{rnnlm_forward.1} parent=1 // pred_fallthru
      _
    // Predicated region
    $region26: #{rnnlm_forward.1} parent=1 // pred_check
      _
    $region27: #{rnnlm_forward.1} parent=1 // pred_check_branch
      %30 = sbr.rel (0) target = $region29
    $region28: #{rnnlm_forward.1} parent=1 // pred_region
      _
    $region29: #{rnnlm_forward.1} parent=1 // pred_fallthru
      _
    // Predicated region
    $region30: #{rnnlm_forward.1} parent=1 // pred_check
      _
    $region31: #{rnnlm_forward.1} parent=1 // pred_check_branch
      %32 = sbr.rel (0) target = $region33
    $region32: #{rnnlm_forward.1} parent=1 // pred_region
      _
    $region33: #{rnnlm_forward.1} parent=1 // pred_fallthru
      _
    %v34 = vld [vmem:[%s0] sm:$0xff]
    %v35 = vld [vmem:[%s0 + $0x8] sm:$0xff]
    %v36 = vld [vmem:[%s0 + $0x10] sm:$0xff]
    %v37 = vld [vmem:[%s0 + $0x18] sm:$0xff]
    %v38 = vld [vmem:[%s0 + $0x20] sm:$0xff]
    %v39 = vld [vmem:[%s0 + $0x28] sm:$0xff]
    %v40 = vld [vmem:[%s0 + $0x30] sm:$0xff]
    %v41 = vld [vmem:[%s0 + $0x38] sm:$0xff]
    %v42 = vlaneseq
    %v43 = vand.u32 %v42, 127
    %44 = vset.pattern.permute.xlu0 0
    %45 = vperm.xlu0 %44, %v34
    %v46 = vpop.permute.xlu0 %45
    %47 = vset.pattern.permute.xlu0 0
    %48 = vperm.xlu0 %47, %v35
    %v49 = vpop.permute.xlu0 %48
    %50 = vset.pattern.permute.xlu0 0
    %51 = vperm.xlu0 %50, %v36
    %v52 = vpop.permute.xlu0 %51
    %53 = vset.pattern.permute.xlu0 0
    %54 = vperm.xlu0 %53, %v37
    %v55 = vpop.permute.xlu0 %54
    %56 = vset.pattern.permute.xlu0 0
    %57 = vperm.xlu0 %56, %v38
    %v58 = vpop.permute.xlu0 %57
    %59 = vset.pattern.permute.xlu0 0
    %60 = vperm.xlu0 %59, %v39
    %v61 = vpop.permute.xlu0 %60
    %62 = vset.pattern.permute.xlu0 0
    %63 = vperm.xlu0 %62, %v40
    %v64 = vpop.permute.xlu0 %63
    %65 = vset.pattern.permute.xlu0 0
    %66 = vperm.xlu0 %65, %v41
    %v67 = vpop.permute.xlu0 %66
    %vm68 = vcmp.eq.s32.totalorder %v46, %v43
    %vm69 = vcmp.eq.s32.totalorder %v49, %v43
    %vm70 = vcmp.eq.s32.totalorder %v52, %v43
    %vm71 = vcmp.eq.s32.totalorder %v55, %v43
    %vm72 = vcmp.eq.s32.totalorder %v58, %v43
    %vm73 = vcmp.eq.s32.totalorder %v61, %v43
    %vm74 = vcmp.eq.s32.totalorder %v64, %v43
    %vm75 = vcmp.eq.s32.totalorder %v67, %v43
    %v76 = vsel %vm68, 1.0, 0.0
    %v77 = vsel %vm69, 1.0, 0.0
    %v78 = vsel %vm70, 1.0, 0.0
    %v79 = vsel %vm71, 1.0, 0.0
    %v80 = vsel %vm72, 1.0, 0.0
    %v81 = vsel %vm73, 1.0, 0.0
    %v82 = vsel %vm74, 1.0, 0.0
    %v83 = vsel %vm75, 1.0, 0.0
    %v84 = vpack.c.bf16 %v77, %v76
    %v85 = vpack.c.bf16 %v79, %v78
    %v86 = vpack.c.bf16 %v81, %v80
    %v87 = vpack.c.bf16 %v83, %v82
    %v88 = vld [vmem:[%s1] sm:$0xf]
    %v89 = vld [vmem:[%s1 + $0x4] sm:$0xf]
    %v90 = vld [vmem:[%s1 + $0x8] sm:$0xf]
    %v91 = vld [vmem:[%s1 + $0xc] sm:$0xf]
    %v92 = vld [vmem:[%s1 + $0x10] sm:$0xf]
    %v93 = vld [vmem:[%s1 + $0x14] sm:$0xf]
    %v94 = vld [vmem:[%s1 + $0x18] sm:$0xf]
    %v95 = vld [vmem:[%s1 + $0x1c] sm:$0xf]
    %v96 = vld [vmem:[%s1 + $0x20] sm:$0xf]
    %v97 = vld [vmem:[%s1 + $0x24] sm:$0xf]
    %v98 = vld [vmem:[%s1 + $0x28] sm:$0xf]
    %v99 = vld [vmem:[%s1 + $0x2c] sm:$0xf]
    %v100 = vld [vmem:[%s1 + $0x30] sm:$0xf]
    %v101 = vld [vmem:[%s1 + $0x34] sm:$0xf]
    %v102 = vld [vmem:[%s1 + $0x38] sm:$0xf]
    %v103 = vld [vmem:[%s1 + $0x3c] sm:$0xf]
    %v120 = vunpack.c.l.b16 %v88
    %v121 = vunpack.c.l.b16 %v89
    %v122 = vunpack.c.l.b16 %v90
    %v123 = vunpack.c.l.b16 %v91
    %v124 = vunpack.c.l.b16 %v92
    %v125 = vunpack.c.l.b16 %v93
    %v126 = vunpack.c.l.b16 %v94
    %v127 = vunpack.c.l.b16 %v95
    %v128 = vunpack.c.l.b16 %v96
    %v129 = vunpack.c.l.b16 %v97
    %v130 = vunpack.c.l.b16 %v98
    %v131 = vunpack.c.l.b16 %v99
    %v132 = vunpack.c.l.b16 %v100
    %v133 = vunpack.c.l.b16 %v101
    %v134 = vunpack.c.l.b16 %v102
    %v135 = vunpack.c.l.b16 %v103
    %v136 = vpack.c.b16 %v121, %v120
    %v137 = vpack.c.b16 %v123, %v122
    %v138 = vpack.c.b16 %v125, %v124
    %v139 = vpack.c.b16 %v127, %v126
    %v140 = vpack.c.b16 %v129, %v128
    %v141 = vpack.c.b16 %v131, %v130
    %v142 = vpack.c.b16 %v133, %v132
    %v143 = vpack.c.b16 %v135, %v134
    %152 = vmatprep.subr.bf16.mxu0 0
    %153 = vmatpush1.bf16.msra.mxu0 %v136
    %154 = vmatprep.subr.bf16.mxu0 0
    %155 = vmatpush1.bf16.msra.mxu0 %v137
    %156 = vmatprep.subr.bf16.mxu0 0
    %157 = vmatpush1.bf16.msra.mxu0 %v138
    %158 = vmatprep.subr.bf16.mxu0 0
    %159 = vmatpush1.bf16.msra.mxu0 %v139
    %160 = vmatprep.subr.bf16.mxu0 0
    %161 = vmatpush1.bf16.msra.mxu0 %v140
    %162 = vmatprep.subr.bf16.mxu0 0
    %163 = vmatpush1.bf16.msra.mxu0 %v141
    %164 = vmatprep.subr.bf16.mxu0 0
    %165 = vmatpush1.bf16.msra.mxu0 %v142
    %166 = vmatprep.subr.bf16.mxu0 0
    %167 = vmatpush1.bf16.msra.mxu0 %v143
    %168 = vmatprep.subr.bf16.mxu0 0
    %169 = vmatpush1.bf16.msra.mxu0 0
    %170 = vmatprep.subr.bf16.mxu0 0
    %171 = vmatpush1.bf16.msra.mxu0 0
    %172 = vmatprep.subr.bf16.mxu0 0
    %173 = vmatpush1.bf16.msra.mxu0 0
    %174 = vmatprep.subr.bf16.mxu0 0
    %175 = vmatpush1.bf16.msra.mxu0 0
    %176 = vmatprep.subr.bf16.mxu0 0
    %177 = vmatpush1.bf16.msra.mxu0 0
    %178 = vmatprep.subr.bf16.mxu0 0
    %179 = vmatpush1.bf16.msra.mxu0 0
    %180 = vmatprep.subr.bf16.mxu0 0
    %181 = vmatpush1.bf16.msra.mxu0 0
    %182 = vmatprep.subr.bf16.mxu0 0
    %183 = vmatpush1.bf16.msra.mxu0 0
    %184 = vmatprep.mubr.bf16.mxu0 0
    %185 = vmatmul.mubr.bf16.gmra.mrb[0].mxu0 %v84
    %v186 = vpop.f32.mrb[0].mxu0
    %v187 = vadd.f32 0.0, %v186
    %v188 = vpop.f32.mrb[0].mxu0
    %v189 = vpop.f32.mrb[0].mxu0
    %v190 = vadd.f32 0.0, %v189
    %v191 = vpop.f32.mrb[0].mxu0
    %192 = vmatprep.mubr.bf16.mxu0 0
    %193 = vmatmul.mubr.bf16.gmra.mrb[0].mxu0 %v85
    %v194 = vpop.f32.mrb[0].mxu0
    %v195 = vadd.f32 0.0, %v194
    %v196 = vpop.f32.mrb[0].mxu0
    %v197 = vpop.f32.mrb[0].mxu0
    %v198 = vadd.f32 0.0, %v197
    %v199 = vpop.f32.mrb[0].mxu0
    %200 = vmatprep.mubr.bf16.mxu0 0
    %201 = vmatmul.mubr.bf16.gmra.mrb[0].mxu0 %v86
    %v202 = vpop.f32.mrb[0].mxu0
    %v203 = vadd.f32 0.0, %v202
    %v204 = vpop.f32.mrb[0].mxu0
    %v205 = vpop.f32.mrb[0].mxu0
    %v206 = vadd.f32 0.0, %v205
    %v207 = vpop.f32.mrb[0].mxu0
    %208 = vmatprep.mubr.bf16.mxu0 0
    %209 = vmatmul.mubr.bf16.gmra.mrb[0].mxu0 %v87
    %v210 = vpop.f32.mrb[0].mxu0
    %v211 = vadd.f32 0.0, %v210
    %v212 = vpop.f32.mrb[0].mxu0
    %v213 = vpop.f32.mrb[0].mxu0
    %v214 = vadd.f32 0.0, %v213
    %v215 = vpop.f32.mrb[0].mxu0
    %216 = vdwg.mxu0
    %v217 = vpack.c.bf16 %v190, %v187
    %v218 = vpack.c.bf16 %v198, %v195
    %v219 = vpack.c.bf16 %v206, %v203
    %v220 = vpack.c.bf16 %v214, %v211
    %v221 = vld [vmem:[%s4] sm:$0xf]
    %v222 = vld [vmem:[%s4 + $0x4] sm:$0xf]
    %v223 = vld [vmem:[%s4 + $0x8] sm:$0xf]
    %v224 = vld [vmem:[%s4 + $0xc] sm:$0xf]
    %v225 = vld [vmem:[%s5] sm:$0x1]
    %v227 = vlaneseq
    %v228 = vshrl.u32 %v227, 7
    %v229 = vsub.s32 0, %v228
    %v230 = vrot.slane %v225, %v229
    %v236 = vunpack.c.l.b16 %v221
    %v237 = vunpack.c.l.b16 %v222
    %v238 = vunpack.c.l.b16 %v223
    %v239 = vunpack.c.l.b16 %v224
    %v240 = vpack.c.b16 %v237, %v236
    %v241 = vpack.c.b16 %v239, %v238
    %vm244 = vcmask 261120
    %v246 = vsel %vm244, %v217, 0
    %v249 = vsel %vm244, %v218, 0
    %v252 = vsel %vm244, %v219, 0
    %v255 = vsel %vm244, %v220, 0
    %257 = vmatprep.subr.bf16.mxu0 0
    %258 = vmatpush1.bf16.msra.mxu0 %v240
    %259 = vmatprep.subr.bf16.mxu0 0
    %260 = vmatpush1.bf16.msra.mxu0 %v241
    %261 = vmatprep.subr.bf16.mxu0 0
    %262 = vmatpush1.bf16.msra.mxu0 0
    %263 = vmatprep.subr.bf16.mxu0 0
    %264 = vmatpush1.bf16.msra.mxu0 0
    %265 = vmatprep.subr.bf16.mxu0 0
    %266 = vmatpush1.bf16.msra.mxu0 0
    %267 = vmatprep.subr.bf16.mxu0 0
    %268 = vmatpush1.bf16.msra.mxu0 0
    %269 = vmatprep.subr.bf16.mxu0 0
    %270 = vmatpush1.bf16.msra.mxu0 0
    %271 = vmatprep.subr.bf16.mxu0 0
    %272 = vmatpush1.bf16.msra.mxu0 0
    %273 = vmatprep.subr.bf16.mxu0 0
    %274 = vmatpush1.bf16.msra.mxu0 0
    %275 = vmatprep.subr.bf16.mxu0 0
    %276 = vmatpush1.bf16.msra.mxu0 0
    %277 = vmatprep.subr.bf16.mxu0 0
    %278 = vmatpush1.bf16.msra.mxu0 0
    %279 = vmatprep.subr.bf16.mxu0 0
    %280 = vmatpush1.bf16.msra.mxu0 0
    %281 = vmatprep.subr.bf16.mxu0 0
    %282 = vmatpush1.bf16.msra.mxu0 0
    %283 = vmatprep.subr.bf16.mxu0 0
    %284 = vmatpush1.bf16.msra.mxu0 0
    %285 = vmatprep.subr.bf16.mxu0 0
    %286 = vmatpush1.bf16.msra.mxu0 0
    %287 = vmatprep.subr.bf16.mxu0 0
    %288 = vmatpush1.bf16.msra.mxu0 0
    %289 = vmatprep.mubr.bf16.mxu0 0
    %290 = vmatmul.mubr.bf16.gmra.mrb[0].mxu0 %v246
    %v291 = vpop.f32.mrb[0].mxu0
    %v292 = vadd.f32 %v230, %v291
    %v293 = vpop.f32.mrb[0].mxu0
    %v294 = vpop.f32.mrb[0].mxu0
    %v295 = vadd.f32 %v230, %v294
    %v296 = vpop.f32.mrb[0].mxu0
    %297 = vmatprep.mubr.bf16.mxu0 0
    %298 = vmatmul.mubr.bf16.gmra.mrb[0].mxu0 %v249
    %v299 = vpop.f32.mrb[0].mxu0
    %v300 = vadd.f32 %v230, %v299
    %v301 = vpop.f32.mrb[0].mxu0
    %v302 = vpop.f32.mrb[0].mxu0
    %v303 = vadd.f32 %v230, %v302
    %v304 = vpop.f32.mrb[0].mxu0
    %305 = vmatprep.mubr.bf16.mxu0 0
    %306 = vmatmul.mubr.bf16.gmra.mrb[0].mxu0 %v252
    %v307 = vpop.f32.mrb[0].mxu0
    %v308 = vadd.f32 %v230, %v307
    %v309 = vpop.f32.mrb[0].mxu0
    %v310 = vpop.f32.mrb[0].mxu0
    %v311 = vadd.f32 %v230, %v310
    %v312 = vpop.f32.mrb[0].mxu0
    %313 = vmatprep.mubr.bf16.mxu0 0
    %314 = vmatmul.mubr.bf16.gmra.mrb[0].mxu0 %v255
    %v315 = vpop.f32.mrb[0].mxu0
    %v316 = vadd.f32 %v230, %v315
    %v317 = vpop.f32.mrb[0].mxu0
    %v318 = vpop.f32.mrb[0].mxu0
    %v319 = vadd.f32 %v230, %v318
    %v320 = vpop.f32.mrb[0].mxu0
    %321 = vdwg.mxu0
    %v322 = vld [vmem:[%s2] sm:$0xff]
    %v323 = vpack.c.bf16 %v322, %v322
    %v324 = vld [vmem:[%s3] sm:$0xf]
    %v325 = vld [vmem:[%s3 + $0x4] sm:$0xf]
    %v326 = vld [vmem:[%s3 + $0x8] sm:$0xf]
    %v327 = vld [vmem:[%s3 + $0xc] sm:$0xf]
    %v332 = vunpack.c.l.b16 %v324
    %v333 = vunpack.c.l.b16 %v325
    %v334 = vunpack.c.l.b16 %v326
    %v335 = vunpack.c.l.b16 %v327
    %v336 = vpack.c.b16 %v333, %v332
    %v337 = vpack.c.b16 %v335, %v334
    %v341 = vsel %vm244, %v323, 0
    %343 = vmatprep.subr.bf16.mxu0 0
    %344 = vmatpush1.bf16.msra.mxu0 %v336
    %345 = vmatprep.subr.bf16.mxu0 0
    %346 = vmatpush1.bf16.msra.mxu0 %v337
    %347 = vmatprep.subr.bf16.mxu0 0
    %348 = vmatpush1.bf16.msra.mxu0 0
    %349 = vmatprep.subr.bf16.mxu0 0
    %350 = vmatpush1.bf16.msra.mxu0 0
    %351 = vmatprep.subr.bf16.mxu0 0
    %352 = vmatpush1.bf16.msra.mxu0 0
    %353 = vmatprep.subr.bf16.mxu0 0
    %354 = vmatpush1.bf16.msra.mxu0 0
    %355 = vmatprep.subr.bf16.mxu0 0
    %356 = vmatpush1.bf16.msra.mxu0 0
    %357 = vmatprep.subr.bf16.mxu0 0
    %358 = vmatpush1.bf16.msra.mxu0 0
    %359 = vmatprep.subr.bf16.mxu0 0
    %360 = vmatpush1.bf16.msra.mxu0 0
    %361 = vmatprep.subr.bf16.mxu0 0
    %362 = vmatpush1.bf16.msra.mxu0 0
    %363 = vmatprep.subr.bf16.mxu0 0
    %364 = vmatpush1.bf16.msra.mxu0 0
    %365 = vmatprep.subr.bf16.mxu0 0
    %366 = vmatpush1.bf16.msra.mxu0 0
    %367 = vmatprep.subr.bf16.mxu0 0
    %368 = vmatpush1.bf16.msra.mxu0 0
    %369 = vmatprep.subr.bf16.mxu0 0
    %370 = vmatpush1.bf16.msra.mxu0 0
    %371 = vmatprep.subr.bf16.mxu0 0
    %372 = vmatpush1.bf16.msra.mxu0 0
    %373 = vmatprep.subr.bf16.mxu0 0
    %374 = vmatpush1.bf16.msra.mxu0 0
    %375 = vmatprep.mubr.bf16.mxu0 0
    %376 = vmatmul.mubr.bf16.gmra.mrb[0].mxu0 %v341
    %v377 = vpop.f32.mrb[0].mxu0
    %v378 = vadd.f32 %v292, %v377
    %v379 = vpop.f32.mrb[0].mxu0
    %v380 = vpop.f32.mrb[0].mxu0
    %v381 = vpop.f32.mrb[0].mxu0
    %382 = vdwg.mxu0
    %v383 = vmax.f32 %v378, 0.0
    %384 = vst.msk [vmem:[#allocation2] sm:$0xff] %vm244, %v383
    %v385 = vpack.c.bf16 %v383, %v383
    %v386 = vld [vmem:[%s3] sm:$0xf]
    %v387 = vld [vmem:[%s3 + $0x4] sm:$0xf]
    %v388 = vld [vmem:[%s3 + $0x8] sm:$0xf]
    %v389 = vld [vmem:[%s3 + $0xc] sm:$0xf]
    %v394 = vunpack.c.l.b16 %v386
    %v395 = vunpack.c.l.b16 %v387
    %v396 = vunpack.c.l.b16 %v388
    %v397 = vunpack.c.l.b16 %v389
    %v398 = vpack.c.b16 %v395, %v394
    %v399 = vpack.c.b16 %v397, %v396
    %v403 = vsel %vm244, %v385, 0
    %405 = vmatprep.subr.bf16.mxu0 0
    %406 = vmatpush1.bf16.msra.mxu0 %v398
    %407 = vmatprep.subr.bf16.mxu0 0
    %408 = vmatpush1.bf16.msra.mxu0 %v399
    %409 = vmatprep.subr.bf16.mxu0 0
    %410 = vmatpush1.bf16.msra.mxu0 0
    %411 = vmatprep.subr.bf16.mxu0 0
    %412 = vmatpush1.bf16.msra.mxu0 0
    %413 = vmatprep.subr.bf16.mxu0 0
    %414 = vmatpush1.bf16.msra.mxu0 0
    %415 = vmatprep.subr.bf16.mxu0 0
    %416 = vmatpush1.bf16.msra.mxu0 0
    %417 = vmatprep.subr.bf16.mxu0 0
    %418 = vmatpush1.bf16.msra.mxu0 0
    %419 = vmatprep.subr.bf16.mxu0 0
    %420 = vmatpush1.bf16.msra.mxu0 0
    %421 = vmatprep.subr.bf16.mxu0 0
    %422 = vmatpush1.bf16.msra.mxu0 0
    %423 = vmatprep.subr.bf16.mxu0 0
    %424 = vmatpush1.bf16.msra.mxu0 0
    %425 = vmatprep.subr.bf16.mxu0 0
    %426 = vmatpush1.bf16.msra.mxu0 0
    %427 = vmatprep.subr.bf16.mxu0 0
    %428 = vmatpush1.bf16.msra.mxu0 0
    %429 = vmatprep.subr.bf16.mxu0 0
    %430 = vmatpush1.bf16.msra.mxu0 0
    %431 = vmatprep.subr.bf16.mxu0 0
    %432 = vmatpush1.bf16.msra.mxu0 0
    %433 = vmatprep.subr.bf16.mxu0 0
    %434 = vmatpush1.bf16.msra.mxu0 0
    %435 = vmatprep.subr.bf16.mxu0 0
    %436 = vmatpush1.bf16.msra.mxu0 0
    %437 = vmatprep.mubr.bf16.mxu0 0
    %438 = vmatmul.mubr.bf16.gmra.mrb[0].mxu0 %v403
    %v439 = vpop.f32.mrb[0].mxu0
    %v440 = vadd.f32 %v295, %v439
    %v441 = vpop.f32.mrb[0].mxu0
    %v442 = vpop.f32.mrb[0].mxu0
    %v443 = vpop.f32.mrb[0].mxu0
    %444 = vdwg.mxu0
    %v445 = vmax.f32 %v440, 0.0
    %446 = vst.msk [vmem:[#allocation2 + $0x8] sm:$0xff] %vm244, %v445
    %v447 = vpack.c.bf16 %v445, %v445
    %v448 = vld [vmem:[%s3] sm:$0xf]
    %v449 = vld [vmem:[%s3 + $0x4] sm:$0xf]
    %v450 = vld [vmem:[%s3 + $0x8] sm:$0xf]
    %v451 = vld [vmem:[%s3 + $0xc] sm:$0xf]
    %v456 = vunpack.c.l.b16 %v448
    %v457 = vunpack.c.l.b16 %v449
    %v458 = vunpack.c.l.b16 %v450
    %v459 = vunpack.c.l.b16 %v451
    %v460 = vpack.c.b16 %v457, %v456
    %v461 = vpack.c.b16 %v459, %v458
    %v465 = vsel %vm244, %v447, 0
    %467 = vmatprep.subr.bf16.mxu0 0
    %468 = vmatpush1.bf16.msra.mxu0 %v460
    %469 = vmatprep.subr.bf16.mxu0 0
    %470 = vmatpush1.bf16.msra.mxu0 %v461
    %471 = vmatprep.subr.bf16.mxu0 0
    %472 = vmatpush1.bf16.msra.mxu0 0
    %473 = vmatprep.subr.bf16.mxu0 0
    %474 = vmatpush1.bf16.msra.mxu0 0
    %475 = vmatprep.subr.bf16.mxu0 0
    %476 = vmatpush1.bf16.msra.mxu0 0
    %477 = vmatprep.subr.bf16.mxu0 0
    %478 = vmatpush1.bf16.msra.mxu0 0
    %479 = vmatprep.subr.bf16.mxu0 0
    %480 = vmatpush1.bf16.msra.mxu0 0
    %481 = vmatprep.subr.bf16.mxu0 0
    %482 = vmatpush1.bf16.msra.mxu0 0
    %483 = vmatprep.subr.bf16.mxu0 0
    %484 = vmatpush1.bf16.msra.mxu0 0
    %485 = vmatprep.subr.bf16.mxu0 0
    %486 = vmatpush1.bf16.msra.mxu0 0
    %487 = vmatprep.subr.bf16.mxu0 0
    %488 = vmatpush1.bf16.msra.mxu0 0
    %489 = vmatprep.subr.bf16.mxu0 0
    %490 = vmatpush1.bf16.msra.mxu0 0
    %491 = vmatprep.subr.bf16.mxu0 0
    %492 = vmatpush1.bf16.msra.mxu0 0
    %493 = vmatprep.subr.bf16.mxu0 0
    %494 = vmatpush1.bf16.msra.mxu0 0
    %495 = vmatprep.subr.bf16.mxu0 0
    %496 = vmatpush1.bf16.msra.mxu0 0
    %497 = vmatprep.subr.bf16.mxu0 0
    %498 = vmatpush1.bf16.msra.mxu0 0
    %499 = vmatprep.mubr.bf16.mxu0 0
    %500 = vmatmul.mubr.bf16.gmra.mrb[0].mxu0 %v465
    %v501 = vpop.f32.mrb[0].mxu0
    %v502 = vadd.f32 %v300, %v501
    %v503 = vpop.f32.mrb[0].mxu0
    %v504 = vpop.f32.mrb[0].mxu0
    %v505 = vpop.f32.mrb[0].mxu0
    %506 = vdwg.mxu0
    %v507 = vmax.f32 %v502, 0.0
    %508 = vst.msk [vmem:[#allocation2 + $0x10] sm:$0xff] %vm244, %v507
    %v509 = vpack.c.bf16 %v507, %v507
    %v510 = vld [vmem:[%s3] sm:$0xf]
    %v511 = vld [vmem:[%s3 + $0x4] sm:$0xf]
    %v512 = vld [vmem:[%s3 + $0x8] sm:$0xf]
    %v513 = vld [vmem:[%s3 + $0xc] sm:$0xf]
    %v518 = vunpack.c.l.b16 %v510
    %v519 = vunpack.c.l.b16 %v511
    %v520 = vunpack.c.l.b16 %v512
    %v521 = vunpack.c.l.b16 %v513
    %v522 = vpack.c.b16 %v519, %v518
    %v523 = vpack.c.b16 %v521, %v520
    %v527 = vsel %vm244, %v509, 0
    %529 = vmatprep.subr.bf16.mxu0 0
    %530 = vmatpush1.bf16.msra.mxu0 %v522
    %531 = vmatprep.subr.bf16.mxu0 0
    %532 = vmatpush1.bf16.msra.mxu0 %v523
    %533 = vmatprep.subr.bf16.mxu0 0
    %534 = vmatpush1.bf16.msra.mxu0 0
    %535 = vmatprep.subr.bf16.mxu0 0
    %536 = vmatpush1.bf16.msra.mxu0 0
    %537 = vmatprep.subr.bf16.mxu0 0
    %538 = vmatpush1.bf16.msra.mxu0 0
    %539 = vmatprep.subr.bf16.mxu0 0
    %540 = vmatpush1.bf16.msra.mxu0 0
    %541 = vmatprep.subr.bf16.mxu0 0
    %542 = vmatpush1.bf16.msra.mxu0 0
    %543 = vmatprep.subr.bf16.mxu0 0
    %544 = vmatpush1.bf16.msra.mxu0 0
    %545 = vmatprep.subr.bf16.mxu0 0
    %546 = vmatpush1.bf16.msra.mxu0 0
    %547 = vmatprep.subr.bf16.mxu0 0
    %548 = vmatpush1.bf16.msra.mxu0 0
    %549 = vmatprep.subr.bf16.mxu0 0
    %550 = vmatpush1.bf16.msra.mxu0 0
    %551 = vmatprep.subr.bf16.mxu0 0
    %552 = vmatpush1.bf16.msra.mxu0 0
    %553 = vmatprep.subr.bf16.mxu0 0
    %554 = vmatpush1.bf16.msra.mxu0 0
    %555 = vmatprep.subr.bf16.mxu0 0
    %556 = vmatpush1.bf16.msra.mxu0 0
    %557 = vmatprep.subr.bf16.mxu0 0
    %558 = vmatpush1.bf16.msra.mxu0 0
    %559 = vmatprep.subr.bf16.mxu0 0
    %560 = vmatpush1.bf16.msra.mxu0 0
    %561 = vmatprep.mubr.bf16.mxu0 0
    %562 = vmatmul.mubr.bf16.gmra.mrb[0].mxu0 %v527
    %v563 = vpop.f32.mrb[0].mxu0
    %v564 = vadd.f32 %v303, %v563
    %v565 = vpop.f32.mrb[0].mxu0
    %v566 = vpop.f32.mrb[0].mxu0
    %v567 = vpop.f32.mrb[0].mxu0
    %568 = vdwg.mxu0
    %v569 = vmax.f32 %v564, 0.0
    %570 = vst.msk [vmem:[#allocation2 + $0x18] sm:$0xff] %vm244, %v569
    %v571 = vpack.c.bf16 %v569, %v569
    %v572 = vld [vmem:[%s3] sm:$0xf]
    %v573 = vld [vmem:[%s3 + $0x4] sm:$0xf]
    %v574 = vld [vmem:[%s3 + $0x8] sm:$0xf]
    %v575 = vld [vmem:[%s3 + $0xc] sm:$0xf]
    %v580 = vunpack.c.l.b16 %v572
    %v581 = vunpack.c.l.b16 %v573
    %v582 = vunpack.c.l.b16 %v574
    %v583 = vunpack.c.l.b16 %v575
    %v584 = vpack.c.b16 %v581, %v580
    %v585 = vpack.c.b16 %v583, %v582
    %v589 = vsel %vm244, %v571, 0
    %591 = vmatprep.subr.bf16.mxu0 0
    %592 = vmatpush1.bf16.msra.mxu0 %v584
    %593 = vmatprep.subr.bf16.mxu0 0
    %594 = vmatpush1.bf16.msra.mxu0 %v585
    %595 = vmatprep.subr.bf16.mxu0 0
    %596 = vmatpush1.bf16.msra.mxu0 0
    %597 = vmatprep.subr.bf16.mxu0 0
    %598 = vmatpush1.bf16.msra.mxu0 0
    %599 = vmatprep.subr.bf16.mxu0 0
    %600 = vmatpush1.bf16.msra.mxu0 0
    %601 = vmatprep.subr.bf16.mxu0 0
    %602 = vmatpush1.bf16.msra.mxu0 0
    %603 = vmatprep.subr.bf16.mxu0 0
    %604 = vmatpush1.bf16.msra.mxu0 0
    %605 = vmatprep.subr.bf16.mxu0 0
    %606 = vmatpush1.bf16.msra.mxu0 0
    %607 = vmatprep.subr.bf16.mxu0 0
    %608 = vmatpush1.bf16.msra.mxu0 0
    %609 = vmatprep.subr.bf16.mxu0 0
    %610 = vmatpush1.bf16.msra.mxu0 0
    %611 = vmatprep.subr.bf16.mxu0 0
    %612 = vmatpush1.bf16.msra.mxu0 0
    %613 = vmatprep.subr.bf16.mxu0 0
    %614 = vmatpush1.bf16.msra.mxu0 0
    %615 = vmatprep.subr.bf16.mxu0 0
    %616 = vmatpush1.bf16.msra.mxu0 0
    %617 = vmatprep.subr.bf16.mxu0 0
    %618 = vmatpush1.bf16.msra.mxu0 0
    %619 = vmatprep.subr.bf16.mxu0 0
    %620 = vmatpush1.bf16.msra.mxu0 0
    %621 = vmatprep.subr.bf16.mxu0 0
    %622 = vmatpush1.bf16.msra.mxu0 0
    %623 = vmatprep.mubr.bf16.mxu0 0
    %624 = vmatmul.mubr.bf16.gmra.mrb[0].mxu0 %v589
    %v625 = vpop.f32.mrb[0].mxu0
    %v626 = vadd.f32 %v308, %v625
    %v627 = vpop.f32.mrb[0].mxu0
    %v628 = vpop.f32.mrb[0].mxu0
    %v629 = vpop.f32.mrb[0].mxu0
    %630 = vdwg.mxu0
    %v631 = vmax.f32 %v626, 0.0
    %632 = vst.msk [vmem:[#allocation2 + $0x20] sm:$0xff] %vm244, %v631
    %v633 = vpack.c.bf16 %v631, %v631
    %v634 = vld [vmem:[%s3] sm:$0xf]
    %v635 = vld [vmem:[%s3 + $0x4] sm:$0xf]
    %v636 = vld [vmem:[%s3 + $0x8] sm:$0xf]
    %v637 = vld [vmem:[%s3 + $0xc] sm:$0xf]
    %v642 = vunpack.c.l.b16 %v634
    %v643 = vunpack.c.l.b16 %v635
    %v644 = vunpack.c.l.b16 %v636
    %v645 = vunpack.c.l.b16 %v637
    %v646 = vpack.c.b16 %v643, %v642
    %v647 = vpack.c.b16 %v645, %v644
    %v651 = vsel %vm244, %v633, 0
    %653 = vmatprep.subr.bf16.mxu0 0
    %654 = vmatpush1.bf16.msra.mxu0 %v646
    %655 = vmatprep.subr.bf16.mxu0 0
    %656 = vmatpush1.bf16.msra.mxu0 %v647
    %657 = vmatprep.subr.bf16.mxu0 0
    %658 = vmatpush1.bf16.msra.mxu0 0
    %659 = vmatprep.subr.bf16.mxu0 0
    %660 = vmatpush1.bf16.msra.mxu0 0
    %661 = vmatprep.subr.bf16.mxu0 0
    %662 = vmatpush1.bf16.msra.mxu0 0
    %663 = vmatprep.subr.bf16.mxu0 0
    %664 = vmatpush1.bf16.msra.mxu0 0
    %665 = vmatprep.subr.bf16.mxu0 0
    %666 = vmatpush1.bf16.msra.mxu0 0
    %667 = vmatprep.subr.bf16.mxu0 0
    %668 = vmatpush1.bf16.msra.mxu0 0
    %669 = vmatprep.subr.bf16.mxu0 0
    %670 = vmatpush1.bf16.msra.mxu0 0
    %671 = vmatprep.subr.bf16.mxu0 0
    %672 = vmatpush1.bf16.msra.mxu0 0
    %673 = vmatprep.subr.bf16.mxu0 0
    %674 = vmatpush1.bf16.msra.mxu0 0
    %675 = vmatprep.subr.bf16.mxu0 0
    %676 = vmatpush1.bf16.msra.mxu0 0
    %677 = vmatprep.subr.bf16.mxu0 0
    %678 = vmatpush1.bf16.msra.mxu0 0
    %679 = vmatprep.subr.bf16.mxu0 0
    %680 = vmatpush1.bf16.msra.mxu0 0
    %681 = vmatprep.subr.bf16.mxu0 0
    %682 = vmatpush1.bf16.msra.mxu0 0
    %683 = vmatprep.subr.bf16.mxu0 0
    %684 = vmatpush1.bf16.msra.mxu0 0
    %685 = vmatprep.mubr.bf16.mxu0 0
    %686 = vmatmul.mubr.bf16.gmra.mrb[0].mxu0 %v651
    %v687 = vpop.f32.mrb[0].mxu0
    %v688 = vadd.f32 %v311, %v687
    %v689 = vpop.f32.mrb[0].mxu0
    %v690 = vpop.f32.mrb[0].mxu0
    %v691 = vpop.f32.mrb[0].mxu0
    %692 = vdwg.mxu0
    %v693 = vmax.f32 %v688, 0.0
    %694 = vst.msk [vmem:[#allocation2 + $0x28] sm:$0xff] %vm244, %v693
    %v695 = vpack.c.bf16 %v693, %v693
    %v696 = vld [vmem:[%s3] sm:$0xf]
    %v697 = vld [vmem:[%s3 + $0x4] sm:$0xf]
    %v698 = vld [vmem:[%s3 + $0x8] sm:$0xf]
    %v699 = vld [vmem:[%s3 + $0xc] sm:$0xf]
    %v704 = vunpack.c.l.b16 %v696
    %v705 = vunpack.c.l.b16 %v697
    %v706 = vunpack.c.l.b16 %v698
    %v707 = vunpack.c.l.b16 %v699
    %v708 = vpack.c.b16 %v705, %v704
    %v709 = vpack.c.b16 %v707, %v706
    %v713 = vsel %vm244, %v695, 0
    %715 = vmatprep.subr.bf16.mxu0 0
    %716 = vmatpush1.bf16.msra.mxu0 %v708
    %717 = vmatprep.subr.bf16.mxu0 0
    %718 = vmatpush1.bf16.msra.mxu0 %v709
    %719 = vmatprep.subr.bf16.mxu0 0
    %720 = vmatpush1.bf16.msra.mxu0 0
    %721 = vmatprep.subr.bf16.mxu0 0
    %722 = vmatpush1.bf16.msra.mxu0 0
    %723 = vmatprep.subr.bf16.mxu0 0
    %724 = vmatpush1.bf16.msra.mxu0 0
    %725 = vmatprep.subr.bf16.mxu0 0
    %726 = vmatpush1.bf16.msra.mxu0 0
    %727 = vmatprep.subr.bf16.mxu0 0
    %728 = vmatpush1.bf16.msra.mxu0 0
    %729 = vmatprep.subr.bf16.mxu0 0
    %730 = vmatpush1.bf16.msra.mxu0 0
    %731 = vmatprep.subr.bf16.mxu0 0
    %732 = vmatpush1.bf16.msra.mxu0 0
    %733 = vmatprep.subr.bf16.mxu0 0
    %734 = vmatpush1.bf16.msra.mxu0 0
    %735 = vmatprep.subr.bf16.mxu0 0
    %736 = vmatpush1.bf16.msra.mxu0 0
    %737 = vmatprep.subr.bf16.mxu0 0
    %738 = vmatpush1.bf16.msra.mxu0 0
    %739 = vmatprep.subr.bf16.mxu0 0
    %740 = vmatpush1.bf16.msra.mxu0 0
    %741 = vmatprep.subr.bf16.mxu0 0
    %742 = vmatpush1.bf16.msra.mxu0 0
    %743 = vmatprep.subr.bf16.mxu0 0
    %744 = vmatpush1.bf16.msra.mxu0 0
    %745 = vmatprep.subr.bf16.mxu0 0
    %746 = vmatpush1.bf16.msra.mxu0 0
    %747 = vmatprep.mubr.bf16.mxu0 0
    %748 = vmatmul.mubr.bf16.gmra.mrb[0].mxu0 %v713
    %v749 = vpop.f32.mrb[0].mxu0
    %v750 = vadd.f32 %v316, %v749
    %v751 = vpop.f32.mrb[0].mxu0
    %v752 = vpop.f32.mrb[0].mxu0
    %v753 = vpop.f32.mrb[0].mxu0
    %754 = vdwg.mxu0
    %v755 = vmax.f32 %v750, 0.0
    %756 = vst.msk [vmem:[#allocation2 + $0x30] sm:$0xff] %vm244, %v755
    %v757 = vpack.c.bf16 %v755, %v755
    %v758 = vld [vmem:[%s3] sm:$0xf]
    %v759 = vld [vmem:[%s3 + $0x4] sm:$0xf]
    %v760 = vld [vmem:[%s3 + $0x8] sm:$0xf]
    %v761 = vld [vmem:[%s3 + $0xc] sm:$0xf]
    %v766 = vunpack.c.l.b16 %v758
    %v767 = vunpack.c.l.b16 %v759
    %v768 = vunpack.c.l.b16 %v760
    %v769 = vunpack.c.l.b16 %v761
    %v770 = vpack.c.b16 %v767, %v766
    %v771 = vpack.c.b16 %v769, %v768
    %v775 = vsel %vm244, %v757, 0
    %777 = vmatprep.subr.bf16.mxu0 0
    %778 = vmatpush1.bf16.msra.mxu0 %v770
    %779 = vmatprep.subr.bf16.mxu0 0
    %780 = vmatpush1.bf16.msra.mxu0 %v771
    %781 = vmatprep.subr.bf16.mxu0 0
    %782 = vmatpush1.bf16.msra.mxu0 0
    %783 = vmatprep.subr.bf16.mxu0 0
    %784 = vmatpush1.bf16.msra.mxu0 0
    %785 = vmatprep.subr.bf16.mxu0 0
    %786 = vmatpush1.bf16.msra.mxu0 0
    %787 = vmatprep.subr.bf16.mxu0 0
    %788 = vmatpush1.bf16.msra.mxu0 0
    %789 = vmatprep.subr.bf16.mxu0 0
    %790 = vmatpush1.bf16.msra.mxu0 0
    %791 = vmatprep.subr.bf16.mxu0 0
    %792 = vmatpush1.bf16.msra.mxu0 0
    %793 = vmatprep.subr.bf16.mxu0 0
    %794 = vmatpush1.bf16.msra.mxu0 0
    %795 = vmatprep.subr.bf16.mxu0 0
    %796 = vmatpush1.bf16.msra.mxu0 0
    %797 = vmatprep.subr.bf16.mxu0 0
    %798 = vmatpush1.bf16.msra.mxu0 0
    %799 = vmatprep.subr.bf16.mxu0 0
    %800 = vmatpush1.bf16.msra.mxu0 0
    %801 = vmatprep.subr.bf16.mxu0 0
    %802 = vmatpush1.bf16.msra.mxu0 0
    %803 = vmatprep.subr.bf16.mxu0 0
    %804 = vmatpush1.bf16.msra.mxu0 0
    %805 = vmatprep.subr.bf16.mxu0 0
    %806 = vmatpush1.bf16.msra.mxu0 0
    %807 = vmatprep.subr.bf16.mxu0 0
    %808 = vmatpush1.bf16.msra.mxu0 0
    %809 = vmatprep.mubr.bf16.mxu0 0
    %810 = vmatmul.mubr.bf16.gmra.mrb[0].mxu0 %v775
    %v811 = vpop.f32.mrb[0].mxu0
    %v812 = vadd.f32 %v319, %v811
    %v813 = vpop.f32.mrb[0].mxu0
    %v814 = vpop.f32.mrb[0].mxu0
    %v815 = vpop.f32.mrb[0].mxu0
    %816 = vdwg.mxu0
    %v817 = vmax.f32 %v812, 0.0
    %818 = vst.msk [vmem:[#allocation2 + $0x38] sm:$0xff] %vm244, %v817
    %819 = vst.msk [vmem:[#allocation5] sm:$0xff] %vm244, %v817
    %v820 = vld [vmem:[#allocation2] sm:$0xff]
    %v821 = vld [vmem:[#allocation2 + $0x8] sm:$0xff]
    %v822 = vld [vmem:[#allocation2 + $0x10] sm:$0xff]
    %v823 = vld [vmem:[#allocation2 + $0x18] sm:$0xff]
    %v824 = vld [vmem:[#allocation2 + $0x20] sm:$0xff]
    %v825 = vld [vmem:[#allocation2 + $0x28] sm:$0xff]
    %v826 = vld [vmem:[#allocation2 + $0x30] sm:$0xff]
    %v827 = vld [vmem:[#allocation2 + $0x38] sm:$0xff]
    %v828 = vpack.c.bf16 %v821, %v820
    %v829 = vpack.c.bf16 %v823, %v822
    %v830 = vpack.c.bf16 %v825, %v824
    %v831 = vpack.c.bf16 %v827, %v826
    %v832 = vld [vmem:[%s6] sm:$0xf]
    %v833 = vld [vmem:[%s6 + $0x4] sm:$0xf]
    %v834 = vld [vmem:[%s6 + $0x8] sm:$0xf]
    %v835 = vld [vmem:[%s6 + $0xc] sm:$0xf]
    %v836 = vld [vmem:[%s7] sm:$0x1]
    %v838 = vlaneseq
    %v839 = vshrl.u32 %v838, 7
    %v840 = vsub.s32 0, %v839
    %v841 = vrot.slane %v836, %v840
    %v847 = vunpack.c.l.b16 %v832
    %v848 = vunpack.c.l.b16 %v833
    %v849 = vunpack.c.l.b16 %v834
    %v850 = vunpack.c.l.b16 %v835
    %v851 = vpack.c.b16 %v848, %v847
    %v852 = vpack.c.b16 %v850, %v849
    %v856 = vsel %vm244, %v828, 0
    %v859 = vsel %vm244, %v829, 0
    %v862 = vsel %vm244, %v830, 0
    %v865 = vsel %vm244, %v831, 0
    %867 = vmatprep.subr.bf16.mxu0 0
    %868 = vmatpush1.bf16.msra.mxu0 %v851
    %869 = vmatprep.subr.bf16.mxu0 0
    %870 = vmatpush1.bf16.msra.mxu0 %v852
    %871 = vmatprep.subr.bf16.mxu0 0
    %872 = vmatpush1.bf16.msra.mxu0 0
    %873 = vmatprep.subr.bf16.mxu0 0
    %874 = vmatpush1.bf16.msra.mxu0 0
    %875 = vmatprep.subr.bf16.mxu0 0
    %876 = vmatpush1.bf16.msra.mxu0 0
    %877 = vmatprep.subr.bf16.mxu0 0
    %878 = vmatpush1.bf16.msra.mxu0 0
    %879 = vmatprep.subr.bf16.mxu0 0
    %880 = vmatpush1.bf16.msra.mxu0 0
    %881 = vmatprep.subr.bf16.mxu0 0
    %882 = vmatpush1.bf16.msra.mxu0 0
    %883 = vmatprep.subr.bf16.mxu0 0
    %884 = vmatpush1.bf16.msra.mxu0 0
    %885 = vmatprep.subr.bf16.mxu0 0
    %886 = vmatpush1.bf16.msra.mxu0 0
    %887 = vmatprep.subr.bf16.mxu0 0
    %888 = vmatpush1.bf16.msra.mxu0 0
    %889 = vmatprep.subr.bf16.mxu0 0
    %890 = vmatpush1.bf16.msra.mxu0 0
    %891 = vmatprep.subr.bf16.mxu0 0
    %892 = vmatpush1.bf16.msra.mxu0 0
    %893 = vmatprep.subr.bf16.mxu0 0
    %894 = vmatpush1.bf16.msra.mxu0 0
    %895 = vmatprep.subr.bf16.mxu0 0
    %896 = vmatpush1.bf16.msra.mxu0 0
    %897 = vmatprep.subr.bf16.mxu0 0
    %898 = vmatpush1.bf16.msra.mxu0 0
    %899 = vmatprep.mubr.bf16.mxu0 0
    %900 = vmatmul.mubr.bf16.gmra.mrb[0].mxu0 %v856
    %v901 = vpop.f32.mrb[0].mxu0
    %v902 = vadd.f32 %v841, %v901
    %v903 = vpop.f32.mrb[0].mxu0
    %v904 = vpop.f32.mrb[0].mxu0
    %v905 = vadd.f32 %v841, %v904
    %v906 = vpop.f32.mrb[0].mxu0
    %907 = vmatprep.mubr.bf16.mxu0 0
    %908 = vmatmul.mubr.bf16.gmra.mrb[0].mxu0 %v859
    %v909 = vpop.f32.mrb[0].mxu0
    %v910 = vadd.f32 %v841, %v909
    %v911 = vpop.f32.mrb[0].mxu0
    %v912 = vpop.f32.mrb[0].mxu0
    %v913 = vadd.f32 %v841, %v912
    %v914 = vpop.f32.mrb[0].mxu0
    %915 = vmatprep.mubr.bf16.mxu0 0
    %916 = vmatmul.mubr.bf16.gmra.mrb[0].mxu0 %v862
    %v917 = vpop.f32.mrb[0].mxu0
    %v918 = vadd.f32 %v841, %v917
    %v919 = vpop.f32.mrb[0].mxu0
    %v920 = vpop.f32.mrb[0].mxu0
    %v921 = vadd.f32 %v841, %v920
    %v922 = vpop.f32.mrb[0].mxu0
    %923 = vmatprep.mubr.bf16.mxu0 0
    %924 = vmatmul.mubr.bf16.gmra.mrb[0].mxu0 %v865
    %v925 = vpop.f32.mrb[0].mxu0
    %v926 = vadd.f32 %v841, %v925
    %v927 = vpop.f32.mrb[0].mxu0
    %v928 = vpop.f32.mrb[0].mxu0
    %v929 = vadd.f32 %v841, %v928
    %v930 = vpop.f32.mrb[0].mxu0
    %931 = vdwg.mxu0
    %932 = vst [vmem:[#allocation3] sm:$0xff] %v902
    %933 = vst [vmem:[#allocation3 + $0x8] sm:$0xff] %v905
    %934 = vst [vmem:[#allocation3 + $0x10] sm:$0xff] %v910
    %935 = vst [vmem:[#allocation3 + $0x18] sm:$0xff] %v913
    %936 = vst [vmem:[#allocation3 + $0x20] sm:$0xff] %v918
    %937 = vst [vmem:[#allocation3 + $0x28] sm:$0xff] %v921
    %938 = vst [vmem:[#allocation3 + $0x30] sm:$0xff] %v926
    %939 = vst [vmem:[#allocation3 + $0x38] sm:$0xff] %v929
    // Predicated region
    $region34: #{rnnlm_forward.1} parent=1 // pred_check
      _
    $region35: #{rnnlm_forward.1} parent=1 // pred_check_branch
      %941 = sbr.rel (0) target = $region37
    $region36: #{rnnlm_forward.1} parent=1 // pred_region
      %s943 = ssub.s32 1024, 1024
      %944 = vsyncadd [#allocation4], %s943
      %s945 = sshll.u32 [#allocation3], 4
      %s946 = int_to_ptr.vmem [resolvable:$true] %s945
      %951 = dma.vmem_to_hbm [thread:$0]  %s946, 1024, %s8, [#allocation4], 128, 128, 8
    $region37: #{rnnlm_forward.1} parent=1 // pred_fallthru
      _
    // Predicated region
    $region38: #{rnnlm_forward.1} parent=1 // pred_check
      _
    $region39: #{rnnlm_forward.1} parent=1 // pred_check_branch
      %953 = sbr.rel (0) target = $region41
    $region40: #{rnnlm_forward.1} parent=1 // pred_region
      %s955 = ssub.s32 128, 128
      %956 = vsyncadd [#allocation6], %s955
      %s958 = sshll.u32 [#allocation5], 4
      %s959 = int_to_ptr.vmem [resolvable:$true] %s958
      %961 = dma.vmem_to_hbm [thread:$0]  %s959, 128, %s9, [#allocation6]
    $region41: #{rnnlm_forward.1} parent=1 // pred_fallthru
      _
    // Predicated region
    $region42: #{rnnlm_forward.1} parent=1 // pred_check
      _
    $region43: #{rnnlm_forward.1} parent=1 // pred_check_branch
      %963 = sbr.rel (0) target = $region45
    $region44: #{rnnlm_forward.1} parent=1 // pred_region
      %964 = dma.done [#allocation4], 1024
    $region45: #{rnnlm_forward.1} parent=1 // pred_fallthru
      _
    // Predicated region
    $region46: #{rnnlm_forward.1} parent=1 // pred_check
      _
    $region47: #{rnnlm_forward.1} parent=1 // pred_check_branch
      %966 = sbr.rel (0) target = $region49
    $region48: #{rnnlm_forward.1} parent=1 // pred_region
      %967 = dma.done [#allocation6], 128
    $region49: #{rnnlm_forward.1} parent=1 // pred_fallthru
      _
    %968 = vsyncpa [#allocation4], 1
    %969 = vsyncpa [#allocation6], 1

</llo_original>
